<compile_context>
chip_gen: v5e
topology: v5e:2x2
jax: 0.10.0
libtpu: 0.0.40
codegen_flags: <defaults>
</compile_context>

<pallas_src>
import numpy as np
import jax
import jax.numpy as jnp
from jax.experimental import pallas as pl
from jax.experimental.pallas import tpu as pltpu

_TWO_PI = 2.0 * np.pi
_PI = np.pi
_NC = 16  # per-group constants, padded to 16 lanes
# constant columns:
#   0 cos(t0/2)   1 sin(t0/2)
#   2 sin(ang1)   3 cos(ang1)
#   4 sin(ang2)   5 cos(ang2)
#   6 sin(ang3)   7 cos(ang3)
#   8 need2  (1.0 if ang2 > pi else 2.0)
#   9 cos(t0) 10 sin(t0) 11 cos(t0+t1) 12 sin(t0+t1) 13 cos(t2) 14 sin(t2) 15 pad
_BLOCK_BYTES_TARGET = 2 * 1024 * 1024  # per z block; 2x in + 2x out bufs ~ 8 MiB


def _hh2_math(x, y, cget):
    """Sector classification (sign tests, no arctan2/mod) + coefficient blend.

    cget(j) returns the j-th per-group constant with a broadcastable shape.
    """
    cos_h, sin_h = cget(0), cget(1)
    sinA1, cosA1 = cget(2), cget(3)
    sinA2, cosA2 = cget(4), cget(5)
    sinA3, cosA3 = cget(6), cget(7)
    need2 = cget(8)
    cos0, sin0 = cget(9), cget(10)
    cos01, sin01 = cget(11), cget(12)
    cos2, sin2 = cget(13), cget(14)

    # Rotate z by -theta0/2; the boundary comparisons on
    # z_theta = mod(atan2(y,x) - theta0/2, 2pi) become sign tests.
    xr = x * cos_h + y * sin_h
    yr = y * cos_h - x * sin_h
    upper = yr >= 0.0                         # z_theta in [0, pi]
    pos1 = (xr * sinA1 - yr * cosA1) > 0.0    # sin(ang1 - z_theta) > 0
    pos2 = (xr * sinA2 - yr * cosA2) > 0.0
    pos3 = (xr * sinA3 - yr * cosA3) > 0.0
    in1 = jnp.logical_and(upper, pos1)        # ang1 = t1/2      <= pi always
    # ang2 may lie on either side of pi: need both tests (need2=2) or either (need2=1).
    cnt2 = jnp.where(upper, 1.0, 0.0) + jnp.where(pos2, 1.0, 0.0)
    in2 = cnt2 >= need2
    in3 = jnp.logical_or(upper, pos3)         # ang3 = pi + t2/2 >= pi always

    # Per-sector coefficient blend (sector4 is the fallthrough), with the
    # dx/dy tree collapsed into a sign select: dx = s*cy, dy = -s*cx.
    cx = jnp.where(in1, 1.0, jnp.where(in2, cos01, jnp.where(in3, cos2, cos0)))
    cy = jnp.where(in1, 0.0, jnp.where(in2, sin01, jnp.where(in3, sin2, sin0)))
    s = jnp.where(in1, -1.0, jnp.where(in2, 1.0, jnp.where(in3, -1.0, 1.0)))

    a = x * cx + y * cy
    b = s * (x * cy - y * cx)
    return a, b


def _make_general_kernel(G):
    def kernel(c_ref, z_ref, o_ref):
        # z_ref / o_ref: (tile_n, C, tile_hw);  c_ref: (G, 16) resident.
        x = z_ref[:, :G, :].astype(jnp.float32)
        y = z_ref[:, G:, :].astype(jnp.float32)
        c = c_ref[...].reshape(1, G, _NC)
        cget = lambda j: c[:, :, j:j + 1]     # (1, G, 1) broadcasts over (tn, G, thw)
        a, b = _hh2_math(x, y, cget)
        o_ref[:, :G, :] = a.astype(o_ref.dtype)
        o_ref[:, G:, :] = b.astype(o_ref.dtype)
    return kernel


def _grouped_kernel(c_ref, z_ref, o_ref):
    # z_ref / o_ref: (tile_n, 2, tile_r, 128);  c_ref: (1, 16) for this group.
    x = z_ref[:, 0:1, :, :].astype(jnp.float32)
    y = z_ref[:, 1:2, :, :].astype(jnp.float32)
    c = c_ref[...]
    cget = lambda j: c[0:1, j:j + 1]          # (1, 1) broadcasts everywhere
    a, b = _hh2_math(x, y, cget)
    o_ref[:, 0:1, :, :] = a.astype(o_ref.dtype)
    o_ref[:, 1:2, :, :] = b.astype(o_ref.dtype)


def _make_consts(theta0, theta1, theta2):
    """Per-group constants (G, 16); exactly mirrors the module's clip/angle math."""
    f32 = jnp.float32
    t0 = jnp.clip(theta0.astype(f32), 0.0, _TWO_PI)
    t1 = jnp.clip(theta1.astype(f32), 0.0, _TWO_PI)
    t2 = jnp.clip(theta2.astype(f32), 0.0, _TWO_PI)
    t3 = _TWO_PI - t1
    half = 0.5 * t0
    ang1 = 0.5 * t1
    ang2 = 0.5 * (t1 + t2)
    ang3 = 0.5 * (t1 + t2 + t3)
    need2 = jnp.where(ang2 > _PI, 1.0, 2.0).astype(f32)
    zero = jnp.zeros_like(t0)
    return jnp.stack(
        [jnp.cos(half), jnp.sin(half),
         jnp.sin(ang1), jnp.cos(ang1),
         jnp.sin(ang2), jnp.cos(ang2),
         jnp.sin(ang3), jnp.cos(ang3),
         need2,
         jnp.cos(t0), jnp.sin(t0),
         jnp.cos(t0 + t1), jnp.sin(t0 + t1),
         jnp.cos(t2), jnp.sin(t2),
         zero],
        axis=1).astype(f32)                   # (G, 16)


def _split_for_two_steps(total, tile, align):
    """Shrink `tile` (aligned to `align`) so the axis has >= 2 blocks."""
    if total < 2 * align:
        return tile
    half = (total + 1) // 2
    new = ((half + align - 1) // align) * align
    return min(new, tile)


def householder_order_2(z, theta0, theta1, theta2):
    """Forward of HouseHolder_Order_2.  z: (N, C, H, W); theta*: (C//2,)."""
    N, C, H, W = z.shape
    assert C % 2 == 0 and C >= 2
    G = C // 2
    HW = H * W
    esize = jnp.dtype(z.dtype).itemsize
    consts = _make_consts(theta0, theta1, theta2)

    # Small-C path keeps sublanes full (x/y as whole (tile_r, 128) slabs).
    use_grouped = (C < 8) and (HW % 128 == 0) and (HW >= 128)

    if use_grouped:
        R = HW // 128
        zr = z.reshape(N, 2, G, R, 128)       # free contiguous reshape
        consts_r = consts.reshape(G, 1, _NC)

        max_r = max(8, _BLOCK_BYTES_TARGET // (2 * 128 * esize))
        tile_r = R if R <= max_r else (max_r // 8) * 8
        blk = 2 * tile_r * 128 * esize
        tile_n = int(max(1, min(N, _BLOCK_BYTES_TARGET // blk)))
        num_n, num_r = pl.cdiv(N, tile_n), pl.cdiv(R, tile_r)
        if num_n * G * num_r == 1:            # keep both v7x TensorCores busy
            if N >= 2:
                tile_n = (N + 1) // 2
            elif R >= 16:
                tile_r = _split_for_two_steps(R, tile_r, 8)
            num_n, num_r = pl.cdiv(N, tile_n), pl.cdiv(R, tile_r)

        out = pl.pallas_call(
            _grouped_kernel,
            out_shape=jax.ShapeDtypeStruct((N, 2, G, R, 128), z.dtype),
            grid_spec=pltpu.PrefetchScalarGridSpec(
                num_scalar_prefetch=0,
                grid=(num_n, G, num_r),
                in_specs=[
                    pl.BlockSpec((None, 1, _NC), lambda n, g, r: (g, 0, 0)),
                    pl.BlockSpec((tile_n, 2, None, tile_r, 128),
                                 lambda n, g, r: (n, 0, g, r, 0)),
                ],
                out_specs=pl.BlockSpec((tile_n, 2, None, tile_r, 128),
                                       lambda n, g, r: (n, 0, g, r, 0)),
            ),
            compiler_params=pltpu.CompilerParams(
                dimension_semantics=("parallel", "parallel", "parallel")),
        )(consts_r, zr)
        return out.reshape(N, C, H, W)

    # General path: native (N, C, HW) view, full channel dim per block.
    zf = z.reshape(N, C, HW)                  # free contiguous reshape
    max_hw = max(128, _BLOCK_BYTES_TARGET // (C * esize))
    tile_hw = HW if HW <= max_hw else (max_hw // 128) * 128
    blk = C * tile_hw * esize
    tile_n = int(max(1, min(N, _BLOCK_BYTES_TARGET // blk)))
    num_n, num_t = pl.cdiv(N, tile_n), pl.cdiv(HW, tile_hw)
    if num_n * num_t == 1:                    # keep both v7x TensorCores busy
        if N >= 2:
            tile_n = (N + 1) // 2
        elif HW >= 256:
            tile_hw = _split_for_two_steps(HW, tile_hw, 128)
        num_n, num_t = pl.cdiv(N, tile_n), pl.cdiv(HW, tile_hw)

    out = pl.pallas_call(
        _make_general_kernel(G),
        out_shape=jax.ShapeDtypeStruct((N, C, HW), z.dtype),
        grid_spec=pltpu.PrefetchScalarGridSpec(
            num_scalar_prefetch=0,
            grid=(num_n, num_t),
            in_specs=[
                pl.BlockSpec((G, _NC), lambda n, t: (0, 0)),       # resident consts
                pl.BlockSpec((tile_n, C, tile_hw), lambda n, t: (n, 0, t)),
            ],
            out_specs=pl.BlockSpec((tile_n, C, tile_hw), lambda n, t: (n, 0, t)),
        ),
        compiler_params=pltpu.CompilerParams(
            dimension_semantics=("parallel", "parallel")),
    )(consts, zf)
    return out.reshape(N, C, H, W)


def _reference(z, theta0, theta1, theta2):
    """Pure-JAX mirror of the PyTorch forward (for validation)."""
    C = z.shape[1]
    G = C // 2
    t0 = jnp.clip(theta0.reshape(1, G, 1, 1), 0.0, _TWO_PI)
    t1 = jnp.clip(theta1.reshape(1, G, 1, 1), 0.0, _TWO_PI)
    t2 = jnp.clip(theta2.reshape(1, G, 1, 1), 0.0, _TWO_PI)
    x, y = z[:, :G], z[:, G:]
    z_theta = jnp.mod(jnp.arctan2(y, x) - 0.5 * t0, _TWO_PI)
    t3 = _TWO_PI - t1
    ang1 = 0.5 * t1
    ang2 = 0.5 * (t1 + t2)
    ang3 = 0.5 * (t1 + t2 + t3)
    s1 = jnp.logical_and(z_theta >= 0, z_theta < ang1)
    s2 = jnp.logical_and(z_theta >= ang1, z_theta < ang2)
    s3 = jnp.logical_and(z_theta >= ang2, z_theta < ang3)
    s4 = z_theta >= ang3
    a2 = x * jnp.cos(t0 + t1) + y * jnp.sin(t0 + t1)
    b2 = x * jnp.sin(t0 + t1) - y * jnp.cos(t0 + t1)
    a3 = x * jnp.cos(t2) + y * jnp.sin(t2)
    b3 = -x * jnp.sin(t2) + y * jnp.cos(t2)
    a4 = x * jnp.cos(t0) + y * jnp.sin(t0)
    b4 = x * jnp.sin(t0) - y * jnp.cos(t0)
    a = x * s1 + a2 * s2 + a3 * s3 + a4 * s4
    b = y * s1 + b2 * s2 + b3 * s3 + b4 * s4
    return jnp.concatenate([a, b], axis=1)


if __name__ == "__main__":
    key = jax.random.PRNGKey(0)

    def run_case(case_key, N, C, H, W):
        kz, k0, k1, k2 = jax.random.split(case_key, 4)
        G = C // 2
        z = jax.random.normal(kz, (N, C, H, W), dtype=jnp.float32)
        theta0 = np.pi * jax.random.uniform(k0, (G,), dtype=jnp.float32)
        theta1 = np.pi * jax.random.uniform(k1, (G,), dtype=jnp.float32)
        theta2 = np.pi * jax.random.uniform(k2, (G,), dtype=jnp.float32)
        out = jax.block_until_ready(householder_order_2(z, theta0, theta1, theta2))
        ref = _reference(z, theta0, theta1, theta2)
        assert out.shape == z.shape
        np.testing.assert_allclose(np.asarray(out), np.asarray(ref),
                                   atol=1e-4, rtol=1e-4)

    ka, kb, kc = jax.random.split(key, 3)
    run_case(ka, 2, 4, 16, 16)   # small-C grouped (sublane-dense) path
    run_case(kb, 2, 16, 7, 9)    # general (N, C, HW) path, ragged lane tail
    run_case(kc, 1, 4, 32, 32)   # grouped path, N=1 tiling / >=2 grid steps

    print("KERNEL_OK")
</pallas_src>

<mosaic_0001>
module attributes {stable_mosaic.version = 11 : i64} {
  func.func @_grouped_kernel(%arg0: i32, %arg1: i32, %arg2: i32, %arg3: memref<1x1x16xf32, #tpu.memory_space<vmem>>, %arg4: memref<2x2x1x2x128xf32, #tpu.memory_space<vmem>>, %arg5: memref<2x2x1x2x128xf32, #tpu.memory_space<vmem>>) attributes {dimension_semantics = [#tpu.dimension_semantics<parallel>, #tpu.dimension_semantics<parallel>, #tpu.dimension_semantics<parallel>], iteration_bounds = array<i64: 1, 2, 1>, scalar_prefetch = 0 : i64, scratch_operands = 0 : i64, tpu.core_type = #tpu.core_type<tc>, window_params = [{transform_indices = @transform_0, window_bounds = array<i64: 1, 1, 16>}, {transform_indices = @transform_1, window_bounds = array<i64: 2, 2, 1, 2, 128>}, {transform_indices = @transform_2, window_bounds = array<i64: 2, 2, 1, 2, 128>}]} {
    %c0 = arith.constant 0 : index
    %c0_0 = arith.constant 0 : index
    %c0_1 = arith.constant 0 : index
    %c0_2 = arith.constant 0 : index
    %c0_3 = arith.constant 0 : index
    %0 = vector.load %arg4[%c0, %c0_0, %c0_1, %c0_2, %c0_3] : memref<2x2x1x2x128xf32, #tpu.memory_space<vmem>>, vector<2x1x1x2x128xf32>
    %1 = vector.shape_cast %0 : vector<2x1x1x2x128xf32> to vector<2x1x2x128xf32>
    %c0_4 = arith.constant 0 : index
    %c1 = arith.constant 1 : index
    %c0_5 = arith.constant 0 : index
    %c0_6 = arith.constant 0 : index
    %c0_7 = arith.constant 0 : index
    %2 = vector.load %arg4[%c0_4, %c1, %c0_5, %c0_6, %c0_7] : memref<2x2x1x2x128xf32, #tpu.memory_space<vmem>>, vector<2x1x1x2x128xf32>
    %3 = vector.shape_cast %2 : vector<2x1x1x2x128xf32> to vector<2x1x2x128xf32>
    %c0_8 = arith.constant 0 : index
    %c0_9 = arith.constant 0 : index
    %c0_10 = arith.constant 0 : index
    %4 = vector.load %arg3[%c0_8, %c0_9, %c0_10] : memref<1x1x16xf32, #tpu.memory_space<vmem>>, vector<1x1x16xf32>
    %5 = vector.shape_cast %4 : vector<1x1x16xf32> to vector<1x16xf32>
    %6 = vector.extract_strided_slice %5 {offsets = [0, 0], sizes = [1, 1], strides = [1, 1]} : vector<1x16xf32> to vector<1x1xf32>
    %7 = vector.extract_strided_slice %5 {offsets = [0, 1], sizes = [1, 1], strides = [1, 1]} : vector<1x16xf32> to vector<1x1xf32>
    %8 = vector.extract_strided_slice %5 {offsets = [0, 2], sizes = [1, 1], strides = [1, 1]} : vector<1x16xf32> to vector<1x1xf32>
    %9 = vector.extract_strided_slice %5 {offsets = [0, 3], sizes = [1, 1], strides = [1, 1]} : vector<1x16xf32> to vector<1x1xf32>
    %10 = vector.extract_strided_slice %5 {offsets = [0, 4], sizes = [1, 1], strides = [1, 1]} : vector<1x16xf32> to vector<1x1xf32>
    %11 = vector.extract_strided_slice %5 {offsets = [0, 5], sizes = [1, 1], strides = [1, 1]} : vector<1x16xf32> to vector<1x1xf32>
    %12 = vector.extract_strided_slice %5 {offsets = [0, 6], sizes = [1, 1], strides = [1, 1]} : vector<1x16xf32> to vector<1x1xf32>
    %13 = vector.extract_strided_slice %5 {offsets = [0, 7], sizes = [1, 1], strides = [1, 1]} : vector<1x16xf32> to vector<1x1xf32>
    %14 = vector.extract_strided_slice %5 {offsets = [0, 8], sizes = [1, 1], strides = [1, 1]} : vector<1x16xf32> to vector<1x1xf32>
    %15 = vector.extract_strided_slice %5 {offsets = [0, 9], sizes = [1, 1], strides = [1, 1]} : vector<1x16xf32> to vector<1x1xf32>
    %16 = vector.extract_strided_slice %5 {offsets = [0, 10], sizes = [1, 1], strides = [1, 1]} : vector<1x16xf32> to vector<1x1xf32>
    %17 = vector.extract_strided_slice %5 {offsets = [0, 11], sizes = [1, 1], strides = [1, 1]} : vector<1x16xf32> to vector<1x1xf32>
    %18 = vector.extract_strided_slice %5 {offsets = [0, 12], sizes = [1, 1], strides = [1, 1]} : vector<1x16xf32> to vector<1x1xf32>
    %19 = vector.extract_strided_slice %5 {offsets = [0, 13], sizes = [1, 1], strides = [1, 1]} : vector<1x16xf32> to vector<1x1xf32>
    %20 = vector.extract_strided_slice %5 {offsets = [0, 14], sizes = [1, 1], strides = [1, 1]} : vector<1x16xf32> to vector<1x1xf32>
    %21 = vector.shape_cast %6 : vector<1x1xf32> to vector<1x1x1x1xf32>
    %22 = vector.broadcast %21 : vector<1x1x1x1xf32> to vector<2x1x2x128xf32>
    %23 = arith.mulf %1, %22 : vector<2x1x2x128xf32>
    %24 = vector.shape_cast %7 : vector<1x1xf32> to vector<1x1x1x1xf32>
    %25 = vector.broadcast %24 : vector<1x1x1x1xf32> to vector<2x1x2x128xf32>
    %26 = arith.mulf %3, %25 : vector<2x1x2x128xf32>
    %27 = arith.addf %23, %26 : vector<2x1x2x128xf32>
    %28 = vector.shape_cast %6 : vector<1x1xf32> to vector<1x1x1x1xf32>
    %29 = vector.broadcast %28 : vector<1x1x1x1xf32> to vector<2x1x2x128xf32>
    %30 = arith.mulf %3, %29 : vector<2x1x2x128xf32>
    %31 = vector.shape_cast %7 : vector<1x1xf32> to vector<1x1x1x1xf32>
    %32 = vector.broadcast %31 : vector<1x1x1x1xf32> to vector<2x1x2x128xf32>
    %33 = arith.mulf %1, %32 : vector<2x1x2x128xf32>
    %34 = arith.subf %30, %33 : vector<2x1x2x128xf32>
    %cst = arith.constant 0.000000e+00 : f32
    %35 = vector.broadcast %cst : f32 to vector<2x1x2x128xf32>
    %36 = arith.cmpf oge, %34, %35 : vector<2x1x2x128xf32>
    %37 = vector.shape_cast %8 : vector<1x1xf32> to vector<1x1x1x1xf32>
    %38 = vector.broadcast %37 : vector<1x1x1x1xf32> to vector<2x1x2x128xf32>
    %39 = arith.mulf %27, %38 : vector<2x1x2x128xf32>
    %40 = vector.shape_cast %9 : vector<1x1xf32> to vector<1x1x1x1xf32>
    %41 = vector.broadcast %40 : vector<1x1x1x1xf32> to vector<2x1x2x128xf32>
    %42 = arith.mulf %34, %41 : vector<2x1x2x128xf32>
    %43 = arith.subf %39, %42 : vector<2x1x2x128xf32>
    %cst_11 = arith.constant 0.000000e+00 : f32
    %44 = vector.broadcast %cst_11 : f32 to vector<2x1x2x128xf32>
    %45 = arith.cmpf ogt, %43, %44 : vector<2x1x2x128xf32>
    %46 = vector.shape_cast %10 : vector<1x1xf32> to vector<1x1x1x1xf32>
    %47 = vector.broadcast %46 : vector<1x1x1x1xf32> to vector<2x1x2x128xf32>
    %48 = arith.mulf %27, %47 : vector<2x1x2x128xf32>
    %49 = vector.shape_cast %11 : vector<1x1xf32> to vector<1x1x1x1xf32>
    %50 = vector.broadcast %49 : vector<1x1x1x1xf32> to vector<2x1x2x128xf32>
    %51 = arith.mulf %34, %50 : vector<2x1x2x128xf32>
    %52 = arith.subf %48, %51 : vector<2x1x2x128xf32>
    %cst_12 = arith.constant 0.000000e+00 : f32
    %53 = vector.broadcast %cst_12 : f32 to vector<2x1x2x128xf32>
    %54 = arith.cmpf ogt, %52, %53 : vector<2x1x2x128xf32>
    %55 = vector.shape_cast %12 : vector<1x1xf32> to vector<1x1x1x1xf32>
    %56 = vector.broadcast %55 : vector<1x1x1x1xf32> to vector<2x1x2x128xf32>
    %57 = arith.mulf %27, %56 : vector<2x1x2x128xf32>
    %58 = vector.shape_cast %13 : vector<1x1xf32> to vector<1x1x1x1xf32>
    %59 = vector.broadcast %58 : vector<1x1x1x1xf32> to vector<2x1x2x128xf32>
    %60 = arith.mulf %34, %59 : vector<2x1x2x128xf32>
    %61 = arith.subf %57, %60 : vector<2x1x2x128xf32>
    %cst_13 = arith.constant 0.000000e+00 : f32
    %62 = vector.broadcast %cst_13 : f32 to vector<2x1x2x128xf32>
    %63 = arith.cmpf ogt, %61, %62 : vector<2x1x2x128xf32>
    %64 = arith.andi %36, %45 : vector<2x1x2x128xi1>
    %cst_14 = arith.constant 1.000000e+00 : f32
    %cst_15 = arith.constant 0.000000e+00 : f32
    %65 = vector.broadcast %cst_14 : f32 to vector<2x1x2x128xf32>
    %66 = vector.broadcast %cst_15 : f32 to vector<2x1x2x128xf32>
    %67 = arith.select %36, %65, %66 : vector<2x1x2x128xi1>, vector<2x1x2x128xf32>
    %cst_16 = arith.constant 1.000000e+00 : f32
    %cst_17 = arith.constant 0.000000e+00 : f32
    %68 = vector.broadcast %cst_16 : f32 to vector<2x1x2x128xf32>
    %69 = vector.broadcast %cst_17 : f32 to vector<2x1x2x128xf32>
    %70 = arith.select %54, %68, %69 : vector<2x1x2x128xi1>, vector<2x1x2x128xf32>
    %71 = arith.addf %67, %70 : vector<2x1x2x128xf32>
    %72 = vector.shape_cast %14 : vector<1x1xf32> to vector<1x1x1x1xf32>
    %73 = vector.broadcast %72 : vector<1x1x1x1xf32> to vector<2x1x2x128xf32>
    %74 = arith.cmpf oge, %71, %73 : vector<2x1x2x128xf32>
    %75 = arith.ori %36, %63 : vector<2x1x2x128xi1>
    %76 = vector.shape_cast %19 : vector<1x1xf32> to vector<1x1x1x1xf32>
    %77 = vector.broadcast %76 : vector<1x1x1x1xf32> to vector<2x1x2x128xf32>
    %78 = vector.shape_cast %15 : vector<1x1xf32> to vector<1x1x1x1xf32>
    %79 = vector.broadcast %78 : vector<1x1x1x1xf32> to vector<2x1x2x128xf32>
    %80 = arith.select %75, %77, %79 : vector<2x1x2x128xi1>, vector<2x1x2x128xf32>
    %81 = vector.shape_cast %17 : vector<1x1xf32> to vector<1x1x1x1xf32>
    %82 = vector.broadcast %81 : vector<1x1x1x1xf32> to vector<2x1x2x128xf32>
    %83 = arith.select %74, %82, %80 : vector<2x1x2x128xi1>, vector<2x1x2x128xf32>
    %cst_18 = arith.constant 1.000000e+00 : f32
    %84 = vector.broadcast %cst_18 : f32 to vector<2x1x2x128xf32>
    %85 = arith.select %64, %84, %83 : vector<2x1x2x128xi1>, vector<2x1x2x128xf32>
    %86 = vector.shape_cast %20 : vector<1x1xf32> to vector<1x1x1x1xf32>
    %87 = vector.broadcast %86 : vector<1x1x1x1xf32> to vector<2x1x2x128xf32>
    %88 = vector.shape_cast %16 : vector<1x1xf32> to vector<1x1x1x1xf32>
    %89 = vector.broadcast %88 : vector<1x1x1x1xf32> to vector<2x1x2x128xf32>
    %90 = arith.select %75, %87, %89 : vector<2x1x2x128xi1>, vector<2x1x2x128xf32>
    %91 = vector.shape_cast %18 : vector<1x1xf32> to vector<1x1x1x1xf32>
    %92 = vector.broadcast %91 : vector<1x1x1x1xf32> to vector<2x1x2x128xf32>
    %93 = arith.select %74, %92, %90 : vector<2x1x2x128xi1>, vector<2x1x2x128xf32>
    %cst_19 = arith.constant 0.000000e+00 : f32
    %94 = vector.broadcast %cst_19 : f32 to vector<2x1x2x128xf32>
    %95 = arith.select %64, %94, %93 : vector<2x1x2x128xi1>, vector<2x1x2x128xf32>
    %cst_20 = arith.constant -1.000000e+00 : f32
    %cst_21 = arith.constant 1.000000e+00 : f32
    %96 = vector.broadcast %cst_20 : f32 to vector<2x1x2x128xf32>
    %97 = vector.broadcast %cst_21 : f32 to vector<2x1x2x128xf32>
    %98 = arith.select %75, %96, %97 : vector<2x1x2x128xi1>, vector<2x1x2x128xf32>
    %cst_22 = arith.constant 1.000000e+00 : f32
    %99 = vector.broadcast %cst_22 : f32 to vector<2x1x2x128xf32>
    %100 = arith.select %74, %99, %98 : vector<2x1x2x128xi1>, vector<2x1x2x128xf32>
    %cst_23 = arith.constant -1.000000e+00 : f32
    %101 = vector.broadcast %cst_23 : f32 to vector<2x1x2x128xf32>
    %102 = arith.select %64, %101, %100 : vector<2x1x2x128xi1>, vector<2x1x2x128xf32>
    %103 = arith.mulf %1, %85 : vector<2x1x2x128xf32>
    %104 = arith.mulf %3, %95 : vector<2x1x2x128xf32>
    %105 = arith.addf %103, %104 : vector<2x1x2x128xf32>
    %106 = arith.mulf %1, %95 : vector<2x1x2x128xf32>
    %107 = arith.mulf %3, %85 : vector<2x1x2x128xf32>
    %108 = arith.subf %106, %107 : vector<2x1x2x128xf32>
    %109 = arith.mulf %102, %108 : vector<2x1x2x128xf32>
    %c0_24 = arith.constant 0 : index
    %c0_25 = arith.constant 0 : index
    %c0_26 = arith.constant 0 : index
    %c0_27 = arith.constant 0 : index
    %c0_28 = arith.constant 0 : index
    %110 = vector.load %arg5[%c0_24, %c0_25, %c0_26, %c0_27, %c0_28] : memref<2x2x1x2x128xf32, #tpu.memory_space<vmem>>, vector<2x1x1x2x128xf32>
    %111 = vector.shape_cast %110 : vector<2x1x1x2x128xf32> to vector<2x1x2x128xf32>
    %112 = vector.shape_cast %105 : vector<2x1x2x128xf32> to vector<2x1x1x2x128xf32>
    tpu.vector_store %arg5[%c0_24, %c0_25, %c0_26, %c0_27, %c0_28], %112 {strides = array<i32>} : memref<2x2x1x2x128xf32, #tpu.memory_space<vmem>>, vector<2x1x1x2x128xf32>,
    %c0_29 = arith.constant 0 : index
    %c1_30 = arith.constant 1 : index
    %c0_31 = arith.constant 0 : index
    %c0_32 = arith.constant 0 : index
    %c0_33 = arith.constant 0 : index
    %113 = vector.load %arg5[%c0_29, %c1_30, %c0_31, %c0_32, %c0_33] : memref<2x2x1x2x128xf32, #tpu.memory_space<vmem>>, vector<2x1x1x2x128xf32>
    %114 = vector.shape_cast %113 : vector<2x1x1x2x128xf32> to vector<2x1x2x128xf32>
    %115 = vector.shape_cast %109 : vector<2x1x2x128xf32> to vector<2x1x1x2x128xf32>
    tpu.vector_store %arg5[%c0_29, %c1_30, %c0_31, %c0_32, %c0_33], %115 {strides = array<i32>} : memref<2x2x1x2x128xf32, #tpu.memory_space<vmem>>, vector<2x1x1x2x128xf32>,
    return
  }
  func.func @transform_0(%arg0: i32, %arg1: i32, %arg2: i32) -> (i32, i32, i32) {
    %c0_i32 = arith.constant 0 : i32
    %c0_i32_0 = arith.constant 0 : i32
    %c0_i32_1 = arith.constant 0 : i32
    return %arg1, %c0_i32, %c0_i32_0 : i32, i32, i32
  }
  func.func @transform_1(%arg0: i32, %arg1: i32, %arg2: i32) -> (i32, i32, i32, i32, i32) {
    %c0_i32 = arith.constant 0 : i32
    %c0_i32_0 = arith.constant 0 : i32
    %c0_i32_1 = arith.constant 0 : i32
    return %arg0, %c0_i32, %arg1, %arg2, %c0_i32_0 : i32, i32, i32, i32, i32
  }
  func.func @transform_2(%arg0: i32, %arg1: i32, %arg2: i32) -> (i32, i32, i32, i32, i32) {
    %c0_i32 = arith.constant 0 : i32
    %c0_i32_0 = arith.constant 0 : i32
    %c0_i32_1 = arith.constant 0 : i32
    return %arg0, %c0_i32, %arg1, %arg2, %c0_i32_0 : i32, i32, i32, i32, i32
  }
}

</mosaic_0001>

<llo_original>
// kernel: tpu_custom_call.1
$region0: #{tpu_custom_call.1}
  #allocation0 [shape = 'u32[]', space=smem, size = 0x4, offset = 0x4, fixed_abs, tag = 'smem constant byte address 0x4 - core index']
  #allocation1 [shape = 'u32[72,128]{1,0:T(1,128)}', space=vmem, size = 0x9000, scoped, tag = 'internal scratch']
  %s0 = inlined_call_operand.hbm [shape: f32[2,1,16], index: 0, kind: input, shape index: {}]
  %s1 = inlined_call_operand.hbm [shape: f32[2,2,2,2,128], index: 1, kind: input, shape index: {}]
  %s2 = inlined_call_operand.hbm [shape: f32[2,2,2,2,128], index: 2, kind: output, shape index: {}]
  %s3 = sld [smem:[#allocation0]]
  $region49: #{tpu_custom_call.1} parent=0
    _
  %s5 = ssub.s32 1, %s3
  %s6 = scalar_select 0, %s5, %s3
  $region1: #{tpu_custom_call.1} parent=0
    #allocation2 [shape = 'u8[1024]{0}', space=vmem, size = 0x400, scoped, tag = 'input window, operand 0']
    #allocation3 [shape = 's32[2]{0}', space=sflag, size = 0x8, scoped, tag = 'scoped memory for tpu_custom_call.1']
    #allocation4 [shape = 's32[2]{0}', space=sflag, size = 0x8, scoped, tag = 'scoped memory for tpu_custom_call.1']
    #allocation5 [shape = 'u8[8192]{0}', space=vmem, size = 0x2000, scoped, tag = 'input window, operand 1']
    #allocation6 [shape = 's32[2]{0}', space=sflag, size = 0x8, scoped, tag = 'scoped memory for tpu_custom_call.1']
    #allocation7 [shape = 'u8[8192]{0}', space=vmem, size = 0x2000, scoped, tag = 'output window, operand 0']
    %7 = vsyncpa [#allocation3], 0
    %s8 = scalar_lea.sflag [#allocation3], 1
    %9 = vsyncpa %s8, 0
    %10 = vsyncpa [#allocation6], 0
    %s11 = scalar_lea.sflag [#allocation6], 1
    %12 = vsyncpa %s11, 0
    %13 = vsyncpa [#allocation4], 0
    %s14 = scalar_lea.sflag [#allocation4], 1
    %15 = vsyncpa %s14, 0
    loop: start=0, step=1, limit=4
    $region2: #{tpu_custom_call.1} parent=1 // loop_pre_header
      _
    $region3: #{tpu_custom_call.1} parent=1 // loop_header
      %s17 = sphi 0, %s21
      %p18 = scmp.ge.s32.totalorder %s17, 4
      %s24 = sphi 0, %s43
      %s25 = sphi 0, %s39
      %s26 = sphi 0, %s35
      %s27 = sphi 0, %s24
      %s28 = sphi 0, %s25
      %s29 = sphi 0, %s26
      %s30 = sphi 0, %s27
      %s31 = sphi 0, %s28
      %s32 = sphi 0, %s29
      %s46 = sphi 0, %s48
      %s49 = sphi 0, %s46
      %s50 = sphi 0, %s49
      %s66 = sphi 0, %s50
      %s76 = sphi 0, %s78
      %s79 = sphi 0, %s76
      %s80 = sphi 0, %s79
      %s96 = sphi 0, %s80
      %s106 = sphi 0, %s108
      %s109 = sphi 0, %s106
      %s110 = sphi 0, %s109
      %s126 = sphi 0, %s110
    $region4: #{tpu_custom_call.1} parent=1 // loop_header_branch
      %20 = sbr.rel (%p18) target = $region8
    $region5: #{tpu_custom_call.1} parent=1 // loop_body
      %s22 = ssub.s32 %s17, 1
      %s23 = ssub.s32 %s17, 2
      %s33 = sadd.s32 1, %s26
      %p34 = scmp.ge.s32.totalorder %s33, 1
      %s35 = scalar_select %p34, 0, %s33
      %s36 = sadd.s32 1, %s25
      %s37 = scalar_select %p34, %s36, %s25
      %p38 = scmp.ge.s32.totalorder %s37, 2
      %s39 = scalar_select %p38, 0, %s37
      %s40 = sadd.s32 1, %s24
      %s41 = scalar_select %p38, %s40, %s24
      %p42 = scmp.ge.s32.totalorder %s41, 1
      %s43 = scalar_select %p42, 0, %s41
      %s44 = ssub.s32 %s25, %s39
      %p45 = scmp.eq.s32.totalorder %s44, 0
      %s47 = sadd.s32 %s46, 1
      %s48 = scalar_select %p45, %s46, %s47
      %p51 = pneg %p45
      %p52 = scmp.eq.s32.totalorder %s17, 1
      %p53 = por %p51, %p52
      %p54 = scmp.ne.s32.totalorder %s46, %s49
      %p55 = scmp.eq.s32.totalorder %s17, 0
      %p56 = por %p54, %p55
      %p57 = scmp.ne.s32.totalorder %s46, %s49
      %p58 = scmp.eq.s32.totalorder %s22, 1
      %p59 = por %p57, %p58
      %p60 = scmp.ne.s32.totalorder %s49, %s50
      %p61 = scmp.eq.s32.totalorder %s22, 0
      %p62 = por %p60, %p61
      %p63 = scmp.ne.s32.totalorder %s49, %s50
      %p64 = scmp.eq.s32.totalorder %s23, 1
      %p65 = por %p63, %p64
      %p67 = scmp.ne.s32.totalorder %s50, %s66
      %p68 = scmp.eq.s32.totalorder %s23, 0
      %p69 = por %p67, %p68
      %s70 = ssub.s32 %s24, %s43
      %s71 = ssub.s32 %s25, %s39
      %s72 = sor.u32 %s70, %s71
      %s73 = ssub.s32 %s26, %s35
      %s74 = sor.u32 %s72, %s73
      %p75 = scmp.eq.s32.totalorder %s74, 0
      %s77 = sadd.s32 %s76, 1
      %s78 = scalar_select %p75, %s76, %s77
      %p81 = pneg %p75
      %p82 = scmp.eq.s32.totalorder %s17, 1
      %p83 = por %p81, %p82
      %p84 = scmp.ne.s32.totalorder %s76, %s79
      %p85 = scmp.eq.s32.totalorder %s17, 0
      %p86 = por %p84, %p85
      %p87 = scmp.ne.s32.totalorder %s76, %s79
      %p88 = scmp.eq.s32.totalorder %s22, 1
      %p89 = por %p87, %p88
      %p90 = scmp.ne.s32.totalorder %s79, %s80
      %p91 = scmp.eq.s32.totalorder %s22, 0
      %p92 = por %p90, %p91
      %p93 = scmp.ne.s32.totalorder %s79, %s80
      %p94 = scmp.eq.s32.totalorder %s23, 1
      %p95 = por %p93, %p94
      %p97 = scmp.ne.s32.totalorder %s80, %s96
      %p98 = scmp.eq.s32.totalorder %s23, 0
      %p99 = por %p97, %p98
      %s100 = ssub.s32 %s24, %s43
      %s101 = ssub.s32 %s25, %s39
      %s102 = sor.u32 %s100, %s101
      %s103 = ssub.s32 %s26, %s35
      %s104 = sor.u32 %s102, %s103
      %p105 = scmp.eq.s32.totalorder %s104, 0
      %s107 = sadd.s32 %s106, 1
      %s108 = scalar_select %p105, %s106, %s107
      %p111 = pneg %p105
      %p112 = scmp.eq.s32.totalorder %s17, 1
      %p113 = por %p111, %p112
      %p114 = scmp.ne.s32.totalorder %s106, %s109
      %p115 = scmp.eq.s32.totalorder %s17, 0
      %p116 = por %p114, %p115
      %p117 = scmp.ne.s32.totalorder %s106, %s109
      %p118 = scmp.eq.s32.totalorder %s22, 1
      %p119 = por %p117, %p118
      %p120 = scmp.ne.s32.totalorder %s109, %s110
      %p121 = scmp.eq.s32.totalorder %s22, 0
      %p122 = por %p120, %p121
      %p123 = scmp.ne.s32.totalorder %s109, %s110
      %p124 = scmp.eq.s32.totalorder %s23, 1
      %p125 = por %p123, %p124
      %p127 = scmp.ne.s32.totalorder %s110, %s126
      %p128 = scmp.eq.s32.totalorder %s23, 0
      %p129 = por %p127, %p128
      %p130 = scmp.le.s32.totalorder 1, %s17
      %p131 = scmp.lt.s32.totalorder %s17, 3
      %p132 = pnand %p130, %p131
      %p133 = pneg %p132
      // Predicated region
      $region9: #{tpu_custom_call.1} parent=5 // pred_check
        _
      $region10: #{tpu_custom_call.1} parent=5 // pred_check_branch
        %135 = sbr.rel (%p132) target = $region12
      $region11: #{tpu_custom_call.1} parent=5 // pred_region
        %s136 = ssub.s32 %s17, 1
      $region12: #{tpu_custom_call.1} parent=5 // pred_fallthru
        _
      %p137 = scmp.lt.s32.totalorder %s17, 2
      // Predicated region
      $region13: #{tpu_custom_call.1} parent=5 // pred_check
        %p138 = pneg %p137
      $region14: #{tpu_custom_call.1} parent=5 // pred_check_branch
        %140 = sbr.rel (%p138) target = $region16
      $region15: #{tpu_custom_call.1} parent=5 // pred_region
        // Predicated region
        $region17: #{tpu_custom_call.1} parent=15 // pred_check
          %p141 = pneg %p56
        $region18: #{tpu_custom_call.1} parent=15 // pred_check_branch
          %143 = sbr.rel (%p141) target = $region20
        $region19: #{tpu_custom_call.1} parent=15 // pred_region
          %s144 = sand.u32 %s46, 1
          %s145 = scalar_lea.sflag [#allocation3], %s144
          %s146 = sand.u32 %s46, 1
          %s147 = scalar_lea.vmem [#allocation2], %s146
          %149 = vsyncadd %s145, 0
          %s150 = scalar_lea.hbm %s0, %s25
          %s152 = sshll.u32 %s150, 4
          %s153 = int_to_ptr.hbm [resolvable:$true] %s152
          %s154 = sshll.u32 %s147, 4
          %s155 = int_to_ptr.vmem [resolvable:$true] %s154
          %157 = dma.hbm_to_vmem [thread:$0]  %s153, 16, %s155, %s145
        $region20: #{tpu_custom_call.1} parent=15 // pred_fallthru
          _
        // Predicated region
        $region21: #{tpu_custom_call.1} parent=15 // pred_check
          %p158 = pneg %p86
        $region22: #{tpu_custom_call.1} parent=15 // pred_check_branch
          %160 = sbr.rel (%p158) target = $region24
        $region23: #{tpu_custom_call.1} parent=15 // pred_region
          %s161 = sand.u32 %s76, 1
          %s162 = scalar_lea.sflag [#allocation6], %s161
          %s163 = sand.u32 %s76, 1
          %s164 = smul.addr %s163, 8
          %s165 = scalar_lea.vmem [#allocation5], %s164
          %s166 = smul.u32 2, %s24
          %168 = vsyncadd %s162, 0
          %s169 = sadd.s32 %s26, %s25
          %s170 = smul.addr %s166, 4
          %s171 = sadd.s32 %s169, %s170
          %s172 = smul.addr %s171, 2
          %s173 = scalar_lea.hbm %s1, %s172
          %s174 = sshll.u32 %s173, 4
          %s175 = int_to_ptr.hbm [resolvable:$true] %s174
          %s176 = sshll.u32 %s165, 4
          %s177 = int_to_ptr.vmem [resolvable:$true] %s176
          %182 = dma.hbm_to_vmem [thread:$0]  %s175, 128, %s177, %s162, 64, 32, 2
        $region24: #{tpu_custom_call.1} parent=15 // pred_fallthru
          _
      $region16: #{tpu_custom_call.1} parent=5 // pred_fallthru
        _
      %p183 = scmp.le.s32.totalorder 1, %s17
      %p184 = scmp.lt.s32.totalorder %s17, 3
      %p185 = pnand %p183, %p184
      %p186 = pneg %p185
      // Predicated region
      $region25: #{tpu_custom_call.1} parent=5 // pred_check
        _
      $region26: #{tpu_custom_call.1} parent=5 // pred_check_branch
        %188 = sbr.rel (%p185) target = $region28
      $region27: #{tpu_custom_call.1} parent=5 // pred_region
        %s189 = ssub.s32 %s17, 1
        %s190 = sand.u32 %s49, 1
        %s191 = scalar_lea.sflag [#allocation3], %s190
        %s192 = sand.u32 %s49, 1
        %s193 = scalar_lea.vmem [#allocation2], %s192
        // Predicated region
        $region29: #{tpu_custom_call.1} parent=27 // pred_check
          %p194 = pneg %p62
        $region30: #{tpu_custom_call.1} parent=27 // pred_check_branch
          %196 = sbr.rel (%p194) target = $region32
        $region31: #{tpu_custom_call.1} parent=27 // pred_region
          %198 = dma.done %s191, 16
        $region32: #{tpu_custom_call.1} parent=27 // pred_fallthru
          _
        %s199 = sand.u32 %s79, 1
        %s200 = scalar_lea.sflag [#allocation6], %s199
        %s201 = sand.u32 %s79, 1
        %s202 = smul.addr %s201, 8
        %s203 = scalar_lea.vmem [#allocation5], %s202
        // Predicated region
        $region33: #{tpu_custom_call.1} parent=27 // pred_check
          %p204 = pneg %p92
        $region34: #{tpu_custom_call.1} parent=27 // pred_check_branch
          %206 = sbr.rel (%p204) target = $region36
        $region35: #{tpu_custom_call.1} parent=27 // pred_region
          %208 = dma.done %s200, 128
        $region36: #{tpu_custom_call.1} parent=27 // pred_fallthru
          _
        %s209 = sand.u32 %s49, 1
        %s210 = scalar_lea.sflag [#allocation3], %s209
        %s211 = sand.u32 %s49, 1
        %s212 = scalar_lea.vmem [#allocation2], %s211
        %p213 = pneg %p62
        %p214 = pneg %p59
        %s215 = sand.u32 %s79, 1
        %s216 = scalar_lea.sflag [#allocation6], %s215
        %s217 = sand.u32 %s79, 1
        %s218 = smul.addr %s217, 8
        %s219 = scalar_lea.vmem [#allocation5], %s218
        %p220 = pneg %p92
        %p221 = pneg %p89
        %p222 = pneg %p122
        %p223 = pneg %p119
        %s224 = sand.u32 %s109, 1
        %s225 = scalar_lea.sflag [#allocation4], %s224
        %s226 = sand.u32 %s109, 1
        %s227 = smul.addr %s226, 8
        %s228 = scalar_lea.vmem [#allocation7], %s227
        %s229 = smul.u32 2, %s27
        %s230 = smul.u32 2, %s27
        %v231 = vld [vmem:[%s203] sm:$0x3]
        %v232 = vld [vmem:[%s203 + $0x4] sm:$0x3]
        %s233 = scalar_lea.vmem %s203, 2 [#allocation5]
        %v234 = vld [vmem:[%s233] sm:$0x3]
        %v235 = vld [vmem:[%s233 + $0x4] sm:$0x3]
        %v236 = vld [vmem:[%s193] sm:$0x1]
        %v238 = vperm.slane %v236, 0
        %239 = vset.pattern.permute.xlu0 0
        %240 = vperm.xlu0 %239, %v238
        %v241 = vpop.permute.xlu0 %240
        %v243 = vmul.f32 %v231, %v241
        %v244 = vmul.f32 %v232, %v241
        %245 = vset.pattern.permute.xlu0 1
        %246 = vperm.xlu0 %245, %v238
        %v247 = vpop.permute.xlu0 %246
        %v249 = vmul.f32 %v234, %v247
        %v250 = vmul.f32 %v235, %v247
        %v251 = vadd.f32 %v243, %v249
        %v252 = vadd.f32 %v244, %v250
        %v253 = vmul.f32 %v234, %v241
        %v254 = vmul.f32 %v235, %v241
        %v255 = vmul.f32 %v231, %v247
        %v256 = vmul.f32 %v232, %v247
        %v257 = vsub.f32 %v253, %v255
        %v258 = vsub.f32 %v254, %v256
        %vm259 = vcmp.ge.f32.partialorder %v257, 0.0
        %vm260 = vcmp.ge.f32.partialorder %v258, 0.0
        %261 = vset.pattern.permute.xlu0 2
        %262 = vperm.xlu0 %261, %v238
        %v263 = vpop.permute.xlu0 %262
        %v265 = vmul.f32 %v251, %v263
        %v266 = vmul.f32 %v252, %v263
        %267 = vset.pattern.permute.xlu0 3
        %268 = vperm.xlu0 %267, %v238
        %v269 = vpop.permute.xlu0 %268
        %v271 = vmul.f32 %v257, %v269
        %v272 = vmul.f32 %v258, %v269
        %v273 = vsub.f32 %v265, %v271
        %v274 = vsub.f32 %v266, %v272
        %vm275 = vcmp.gt.f32.partialorder %v273, 0.0
        %vm276 = vcmp.gt.f32.partialorder %v274, 0.0
        %277 = vset.pattern.permute.xlu0 4
        %278 = vperm.xlu0 %277, %v238
        %v279 = vpop.permute.xlu0 %278
        %v281 = vmul.f32 %v251, %v279
        %v282 = vmul.f32 %v252, %v279
        %283 = vset.pattern.permute.xlu0 5
        %284 = vperm.xlu0 %283, %v238
        %v285 = vpop.permute.xlu0 %284
        %v287 = vmul.f32 %v257, %v285
        %v288 = vmul.f32 %v258, %v285
        %v289 = vsub.f32 %v281, %v287
        %v290 = vsub.f32 %v282, %v288
        %vm291 = vcmp.gt.f32.partialorder %v289, 0.0
        %vm292 = vcmp.gt.f32.partialorder %v290, 0.0
        %293 = vset.pattern.permute.xlu0 6
        %294 = vperm.xlu0 %293, %v238
        %v295 = vpop.permute.xlu0 %294
        %v297 = vmul.f32 %v251, %v295
        %v298 = vmul.f32 %v252, %v295
        %299 = vset.pattern.permute.xlu0 7
        %300 = vperm.xlu0 %299, %v238
        %v301 = vpop.permute.xlu0 %300
        %v303 = vmul.f32 %v257, %v301
        %v304 = vmul.f32 %v258, %v301
        %v305 = vsub.f32 %v297, %v303
        %v306 = vsub.f32 %v298, %v304
        %vm307 = vcmp.gt.f32.partialorder %v305, 0.0
        %vm308 = vcmp.gt.f32.partialorder %v306, 0.0
        %vm309 = vmand %vm259, %vm275
        %vm310 = vmand %vm260, %vm276
        %v311 = vsel %vm259, 1.0, 0.0
        %v312 = vsel %vm260, 1.0, 0.0
        %v313 = vsel %vm291, 1.0, 0.0
        %v314 = vsel %vm292, 1.0, 0.0
        %v315 = vadd.f32 %v311, %v313
        %v316 = vadd.f32 %v312, %v314
        %317 = vset.pattern.permute.xlu0 8
        %318 = vperm.xlu0 %317, %v238
        %v319 = vpop.permute.xlu0 %318
        %vm321 = vcmp.ge.f32.partialorder %v315, %v319
        %vm322 = vcmp.ge.f32.partialorder %v316, %v319
        %vm323 = vmor %vm259, %vm307
        %vm324 = vmor %vm260, %vm308
        %325 = vset.pattern.permute.xlu0 13
        %326 = vperm.xlu0 %325, %v238
        %v327 = vpop.permute.xlu0 %326
        %329 = vset.pattern.permute.xlu0 9
        %330 = vperm.xlu0 %329, %v238
        %v331 = vpop.permute.xlu0 %330
        %v333 = vsel %vm323, %v327, %v331
        %v334 = vsel %vm324, %v327, %v331
        %335 = vset.pattern.permute.xlu0 11
        %336 = vperm.xlu0 %335, %v238
        %v337 = vpop.permute.xlu0 %336
        %v339 = vsel %vm321, %v337, %v333
        %v340 = vsel %vm322, %v337, %v334
        %v341 = vsel %vm309, 1.0, %v339
        %v342 = vsel %vm310, 1.0, %v340
        %343 = vset.pattern.permute.xlu0 14
        %344 = vperm.xlu0 %343, %v238
        %v345 = vpop.permute.xlu0 %344
        %347 = vset.pattern.permute.xlu0 10
        %348 = vperm.xlu0 %347, %v238
        %v349 = vpop.permute.xlu0 %348
        %v351 = vsel %vm323, %v345, %v349
        %v352 = vsel %vm324, %v345, %v349
        %353 = vset.pattern.permute.xlu0 12
        %354 = vperm.xlu0 %353, %v238
        %v355 = vpop.permute.xlu0 %354
        %v357 = vsel %vm321, %v355, %v351
        %v358 = vsel %vm322, %v355, %v352
        %v359 = vsel %vm309, 0.0, %v357
        %v360 = vsel %vm310, 0.0, %v358
        %v361 = vsel %vm323, -1.0, 1.0
        %v362 = vsel %vm324, -1.0, 1.0
        %v363 = vsel %vm321, 1.0, %v361
        %v364 = vsel %vm322, 1.0, %v362
        %v365 = vsel %vm309, -1.0, %v363
        %v366 = vsel %vm310, -1.0, %v364
        %v367 = vmul.f32 %v231, %v341
        %v368 = vmul.f32 %v232, %v342
        %v369 = vmul.f32 %v234, %v359
        %v370 = vmul.f32 %v235, %v360
        %v371 = vadd.f32 %v367, %v369
        %v372 = vadd.f32 %v368, %v370
        %v373 = vmul.f32 %v231, %v359
        %v374 = vmul.f32 %v232, %v360
        %v375 = vmul.f32 %v234, %v341
        %v376 = vmul.f32 %v235, %v342
        %v377 = vsub.f32 %v373, %v375
        %v378 = vsub.f32 %v374, %v376
        %v379 = vmul.f32 %v365, %v377
        %v380 = vmul.f32 %v366, %v378
        %381 = vst [vmem:[%s228] sm:$0x3] %v371
        %382 = vst [vmem:[%s228 + $0x4] sm:$0x3] %v372
        %s383 = scalar_lea.vmem %s228, 2 [#allocation7]
        %384 = vst [vmem:[%s383] sm:$0x3] %v379
        %385 = vst [vmem:[%s383 + $0x4] sm:$0x3] %v380
        %s386 = sand.u32 %s109, 1
        %s387 = scalar_lea.sflag [#allocation4], %s386
        %s388 = sand.u32 %s109, 1
        %s389 = smul.addr %s388, 8
        %s390 = scalar_lea.vmem [#allocation7], %s389
        // Predicated region
        $region37: #{tpu_custom_call.1} parent=27 // pred_check
          %p391 = pneg %p119
        $region38: #{tpu_custom_call.1} parent=27 // pred_check_branch
          %393 = sbr.rel (%p391) target = $region40
        $region39: #{tpu_custom_call.1} parent=27 // pred_region
          %s394 = smul.u32 2, %s27
          %396 = vsyncadd %s387, 0
          %s397 = sadd.s32 %s29, %s28
          %s398 = smul.addr %s394, 4
          %s399 = sadd.s32 %s397, %s398
          %s400 = smul.addr %s399, 2
          %s401 = scalar_lea.hbm %s2, %s400
          %s402 = sshll.u32 %s390, 4
          %s403 = int_to_ptr.vmem [resolvable:$true] %s402
          %s404 = sshll.u32 %s401, 4
          %s405 = int_to_ptr.hbm [resolvable:$true] %s404
          %410 = dma.vmem_to_hbm [thread:$0]  %s403, 128, %s405, %s387, 32, 64, 2
        $region40: #{tpu_custom_call.1} parent=27 // pred_fallthru
          _
      $region28: #{tpu_custom_call.1} parent=5 // pred_fallthru
        _
      %p411 = scmp.le.s32.totalorder 2, %s17
      // Predicated region
      $region41: #{tpu_custom_call.1} parent=5 // pred_check
        %p412 = pneg %p411
      $region42: #{tpu_custom_call.1} parent=5 // pred_check_branch
        %414 = sbr.rel (%p412) target = $region44
      $region43: #{tpu_custom_call.1} parent=5 // pred_region
        %s415 = ssub.s32 %s17, 2
        // Predicated region
        $region45: #{tpu_custom_call.1} parent=43 // pred_check
          %p416 = pneg %p125
        $region46: #{tpu_custom_call.1} parent=43 // pred_check_branch
          %418 = sbr.rel (%p416) target = $region48
        $region47: #{tpu_custom_call.1} parent=43 // pred_region
          %s419 = sand.u32 %s110, 1
          %s420 = scalar_lea.sflag [#allocation4], %s419
          %s421 = sand.u32 %s110, 1
          %s422 = smul.addr %s421, 8
          %s423 = scalar_lea.vmem [#allocation7], %s422
          %425 = dma.done %s420, 128
        $region48: #{tpu_custom_call.1} parent=43 // pred_fallthru
          _
      $region44: #{tpu_custom_call.1} parent=5 // pred_fallthru
        _
    $region6: #{tpu_custom_call.1} parent=1 // loop_footer
      %s21 = sadd.s32 1, %s17
    $region7: #{tpu_custom_call.1} parent=1 // loop_footer_branch
      %16 = sbr.rel target = $region3
    $region8: #{tpu_custom_call.1} parent=1 // loop_exit
      _
    %426 = vsyncpa [#allocation3], 1
    %s427 = scalar_lea.sflag [#allocation3], 1
    %428 = vsyncpa %s427, 1
    %429 = vsyncpa [#allocation6], 1
    %s430 = scalar_lea.sflag [#allocation6], 1
    %431 = vsyncpa %s430, 1
    %432 = vsyncpa [#allocation4], 1
    %s433 = scalar_lea.sflag [#allocation4], 1
    %434 = vsyncpa %s433, 1

</llo_original>
